<compile_context>
chip_gen: v7x
topology: tpu7x:2x2x1
jax: 0.10.0
libtpu: 0.0.40
codegen_flags: <defaults>
</compile_context>

<pallas_src>
import functools

import jax
import jax.numpy as jnp
from jax.experimental import pallas as pl
from jax.experimental.pallas import tpu as pltpu


def _softplus(x):
    # One-exp, overflow-free softplus: max(x, 0) + log1p(exp(-|x|)).
    return jnp.maximum(x, 0.0) + jnp.log1p(jnp.exp(-jnp.abs(x)))


def _fill_blockdiag(w_ref, h_ref):
    """Fill VMEM scratch with the block-diagonal softplus(h) weight.

    w_ref: (c_blk*H_in, c_blk*H_out) VMEM scratch
    h_ref: (c_blk, H_in, H_out)

    Re-filled every grid step: the scratch is per-core and grid axes are
    "parallel", so relying on a "same group as last step" guard is unsafe.
    The fill (softplus over c_blk*H_in*H_out elems + small masked stores) is
    tiny next to the fused MXU push.
    """
    c_blk, h_in, h_out = h_ref.shape
    w_ref[...] = jnp.zeros_like(w_ref)
    for c in range(c_blk):  # static unroll; per-channel softplus streamed in
        w_ref[c * h_in:(c + 1) * h_in, c * h_out:(c + 1) * h_out] = _softplus(
            h_ref[c].astype(jnp.float32))


def _make_kernel(is_final):
    if is_final:
        def kernel(x_ref, h_ref, b_ref, o_ref, w_ref):
            # x_ref: (TILE_B, c_blk*H_in)   h_ref: (c_blk, H_in, 1)
            # b_ref: (1, c_blk)             o_ref: (TILE_B, c_blk)
            # w_ref: (c_blk*H_in, c_blk) scratch (column-packed weight)
            _fill_blockdiag(w_ref, h_ref)
            y = jnp.dot(x_ref[...].astype(jnp.float32), w_ref[...],
                        preferred_element_type=jnp.float32) + b_ref[...]
            # sigmoid via a single EUP tanh, full-lane slab
            o_ref[...] = (0.5 * jnp.tanh(0.5 * y) + 0.5).astype(o_ref.dtype)
    else:
        def kernel(x_ref, h_ref, b_ref, a_ref, o_ref, w_ref):
            # x_ref: (TILE_B, c_blk*H_in)   h_ref: (c_blk, H_in, H_out)
            # b_ref/a_ref: (1, c_blk*H_out) o_ref: (TILE_B, c_blk*H_out)
            # w_ref: (c_blk*H_in, c_blk*H_out) scratch (block-diagonal weight)
            _fill_blockdiag(w_ref, h_ref)
            y = jnp.dot(x_ref[...].astype(jnp.float32), w_ref[...],
                        preferred_element_type=jnp.float32) + b_ref[...]
            g = y + jnp.tanh(a_ref[...]) * jnp.tanh(y)   # one gate row, full-lane
            o_ref[...] = g.astype(o_ref.dtype)
    return kernel


def _vmem_plan():
    """Generation-aware (working-set budget, scoped vmem limit) in bytes."""
    try:
        cap = int(pltpu.get_tpu_info().vmem_capacity_bytes)
    except Exception:
        cap = 64 << 20                     # conservative (v7x per-TC size)
    if cap >= (96 << 20):                  # v5e / v6e: 128 MiB physical
        budget, limit = 40 << 20, 96 << 20
    else:                                  # v7x: 64 MiB per TensorCore
        budget, limit = 20 << 20, 44 << 20
    limit = min(limit, max(cap - (16 << 20), 32 << 20))
    return budget, limit


def _choose_tiles(B, C, H_in, H_out, budget_bytes, itemsize):
    """Pick (TILE_B, c_blk): layout-legal, VMEM-safe, MXU-friendly tiles."""
    sub = {4: 8, 2: 16, 1: 32}.get(itemsize, 8)   # dtype-aware sublane multiple

    def divs(n):
        return [d for d in range(1, n + 1) if n % d == 0]

    cb_cands = [cb for cb in divs(C)
                if cb == C or ((cb * H_in) % 128 == 0 and (cb * H_out) % 128 == 0)]
    tb_cands = [tb for tb in divs(B) if tb == B or tb % sub == 0]

    def bytes_per_step(tb, cb):
        x_b = tb * cb * H_in
        o_b = tb * cb * H_out
        h_b = cb * H_in * H_out
        v_b = 2 * cb * H_out
        scratch = 4 * (cb * H_in) * (cb * H_out)          # f32 scratch
        return itemsize * 2 * (x_b + o_b + h_b + v_b) + scratch

    def score(tb, cb):
        steps = (C // cb) * (B // tb)
        k = cb * H_in
        multi = 1 if steps >= 2 else 0                     # feed both v7x TCs
        mxu = -abs(min(k, 512) - 256)                      # K near MXU-native 256
        return (multi, mxu, min(tb, 512), cb)              # big batch tiles = big DMAs

    fitting = [(tb, cb) for cb in cb_cands for tb in tb_cands
               if bytes_per_step(tb, cb) <= budget_bytes]
    if fitting:
        return max(fitting, key=lambda p: score(*p))
    # Nothing fits the budget: fall back to the smallest legal tiles.
    return min(tb_cands), min(cb_cands)


@functools.partial(jax.jit, static_argnames=("is_final",))
def cdf_mapping_block(x, h, b, a=None, *, is_final=False):
    """
    Args:
      x: [B, C, H_in]  float32
      h: [C, H_in, H_out]
      b: [C, 1, H_out]
      a: [C, 1, H_out]  (only for non-final blocks)
      is_final: static flag (final block requires H_out == 1)

    Returns:
      y: [B, C, H_out]
    """
    B, C, H_in = x.shape
    H_out = h.shape[-1]
    itemsize = jnp.dtype(x.dtype).itemsize

    budget, vmem_limit = _vmem_plan()
    tile_b, c_blk = _choose_tiles(B, C, H_in, H_out, budget, itemsize)
    n_g, n_b = C // c_blk, B // tile_b

    # Contiguous (free) views: lane-dense input / output, lane-packed bias rows.
    x2 = x.reshape(B, C * H_in)
    b2 = b.reshape(1, C * H_out)

    x_spec = pl.BlockSpec((tile_b, c_blk * H_in), lambda g, bt: (bt, g))
    h_spec = pl.BlockSpec((c_blk, H_in, H_out), lambda g, bt: (g, 0, 0))
    v_spec = pl.BlockSpec((1, c_blk * H_out), lambda g, bt: (0, g))
    o_spec = pl.BlockSpec((tile_b, c_blk * H_out), lambda g, bt: (bt, g))

    out_shape = jax.ShapeDtypeStruct((B, C * H_out), x.dtype)
    scratch = [pltpu.VMEM((c_blk * H_in, c_blk * H_out), jnp.float32)]
    cparams = pltpu.CompilerParams(
        dimension_semantics=("parallel", "parallel"),
        vmem_limit_bytes=vmem_limit)

    flops = 2 * B * C * H_in * H_out
    transcendentals = (2 * C * H_in * H_out * n_b
                       + (1 if is_final else 2) * B * C * H_out)
    bytes_accessed = (itemsize * (B * C * H_in + B * C * H_out)
                      + itemsize * n_b * C * H_out * (H_in + (1 if is_final else 2)))
    cost = pl.CostEstimate(flops=flops, transcendentals=transcendentals,
                           bytes_accessed=bytes_accessed)

    kernel = _make_kernel(is_final)
    if is_final:
        args, in_specs = (x2, h, b2), [x_spec, h_spec, v_spec]
    else:
        a2 = a.reshape(1, C * H_out)
        args, in_specs = (x2, h, b2, a2), [x_spec, h_spec, v_spec, v_spec]

    y_flat = pl.pallas_call(
        kernel,
        out_shape=out_shape,
        grid_spec=pltpu.PrefetchScalarGridSpec(
            num_scalar_prefetch=0,
            grid=(n_g, n_b),
            in_specs=in_specs,
            out_specs=o_spec,
            scratch_shapes=scratch),
        compiler_params=cparams,
        cost_estimate=cost,
    )(*args)

    # Contiguous unflatten of the lane-packed output; no data movement.
    return y_flat.reshape(B, C, H_out)


def _reference(x, h, b, a=None, *, is_final=False):
    """Pure-JAX reference of the PyTorch forward for correctness checking."""
    w = jax.nn.softplus(h)                               # [C, H_in, H_out]
    y = jnp.einsum("bci,cio->bco", x, w) + b[None, :, 0, :]
    if is_final:
        g = jax.nn.sigmoid(y)
    else:
        g = y + jnp.tanh(a)[None, :, 0, :] * jnp.tanh(y)
    return g                                             # [B, C, H_out]


# TODO(synk): only forward() is implemented; the module's jacobian()/act_prime()
# methods are not translated (not part of the forward pass).

if __name__ == "__main__":
    # Small shapes consistent with the module: x is [B, C, H_in].
    B, C, H_IN, H_OUT = 8, 4, 32, 32
    cdf_param_means = [0.0, 0.0, 0.0]
    cdf_param_scales = [0.1, 0.1, 0.1]

    key = jax.random.PRNGKey(0)
    kx, kh, kb, ka, kh2, kb2 = jax.random.split(key, 6)

    x = jax.random.normal(kx, (B, C, H_IN), dtype=jnp.float32)

    # ---- non-final block parameters ----
    h = cdf_param_means[0] + cdf_param_scales[0] * jax.random.normal(
        kh, (C, H_IN, H_OUT), dtype=jnp.float32)
    b = cdf_param_means[1] + cdf_param_scales[1] * jax.random.normal(
        kb, (C, 1, H_OUT), dtype=jnp.float32)
    a = cdf_param_means[2] + cdf_param_scales[2] * jax.random.normal(
        ka, (C, 1, H_OUT), dtype=jnp.float32)

    y = cdf_mapping_block(x, h, b, a, is_final=False)
    y = jax.block_until_ready(y)
    y_ref = _reference(x, h, b, a, is_final=False)
    assert y.shape == (B, C, H_OUT)
    assert jnp.allclose(y, y_ref, atol=1e-5, rtol=1e-5), float(
        jnp.max(jnp.abs(y - y_ref)))

    # ---- final block (H_out == 1, sigmoid activation) ----
    h2 = cdf_param_means[0] + cdf_param_scales[0] * jax.random.normal(
        kh2, (C, H_OUT, 1), dtype=jnp.float32)
    b2 = cdf_param_means[1] + cdf_param_scales[1] * jax.random.normal(
        kb2, (C, 1, 1), dtype=jnp.float32)

    y2 = cdf_mapping_block(y, h2, b2, is_final=True)
    y2 = jax.block_until_ready(y2)
    y2_ref = _reference(y_ref, h2, b2, is_final=True)
    assert y2.shape == (B, C, 1)
    assert jnp.allclose(y2, y2_ref, atol=1e-5, rtol=1e-5), float(
        jnp.max(jnp.abs(y2 - y2_ref)))

    print("KERNEL_OK")
</pallas_src>

<mosaic_0001>
module attributes {stable_mosaic.version = 11 : i64} {
  func.func @kernel(%arg0: i32, %arg1: i32, %arg2: memref<8x128xf32, #tpu.memory_space<vmem>>, %arg3: memref<4x32x32xf32, #tpu.memory_space<vmem>>, %arg4: memref<1x128xf32, #tpu.memory_space<vmem>>, %arg5: memref<1x128xf32, #tpu.memory_space<vmem>>, %arg6: memref<8x128xf32, #tpu.memory_space<vmem>>, %arg7: memref<128x128xf32, #tpu.memory_space<vmem>>) attributes {dimension_semantics = [#tpu.dimension_semantics<parallel>, #tpu.dimension_semantics<parallel>], iteration_bounds = array<i64: 1, 1>, scalar_prefetch = 0 : i64, scratch_operands = 1 : i64, tpu.core_type = #tpu.core_type<tc>, window_params = [{transform_indices = @transform_0, window_bounds = array<i64: 8, 128>}, {transform_indices = @transform_1, window_bounds = array<i64: 4, 32, 32>}, {transform_indices = @transform_2, window_bounds = array<i64: 1, 128>}, {transform_indices = @transform_3, window_bounds = array<i64: 1, 128>}, {transform_indices = @transform_4, window_bounds = array<i64: 8, 128>}]} {
    %cst = arith.constant 0.000000e+00 : f32
    %0 = vector.broadcast %cst : f32 to vector<128x128xf32>
    %c0 = arith.constant 0 : index
    %c0_0 = arith.constant 0 : index
    %1 = vector.load %arg7[%c0, %c0_0] : memref<128x128xf32, #tpu.memory_space<vmem>>, vector<128x128xf32>
    tpu.vector_store %arg7[%c0, %c0_0], %0 {strides = array<i32>} : memref<128x128xf32, #tpu.memory_space<vmem>>, vector<128x128xf32>,
    %c0_1 = arith.constant 0 : index
    %c0_2 = arith.constant 0 : index
    %c0_3 = arith.constant 0 : index
    %2 = vector.load %arg3[%c0_1, %c0_2, %c0_3] : memref<4x32x32xf32, #tpu.memory_space<vmem>>, vector<1x32x32xf32>
    %3 = vector.shape_cast %2 : vector<1x32x32xf32> to vector<32x32xf32>
    %cst_4 = arith.constant 0.000000e+00 : f32
    %4 = vector.broadcast %cst_4 : f32 to vector<32x32xf32>
    %5 = arith.maximumf %3, %4 : vector<32x32xf32>
    %6 = math.absf %3 : vector<32x32xf32>
    %cst_5 = arith.constant 0.000000e+00 : f32
    %7 = vector.broadcast %cst_5 : f32 to vector<32x32xf32>
    %8 = arith.subf %7, %6 : vector<32x32xf32>
    %9 = math.exp %8 : vector<32x32xf32>
    %10 = math.log1p %9 : vector<32x32xf32>
    %11 = arith.addf %5, %10 : vector<32x32xf32>
    %c0_6 = arith.constant 0 : index
    %c0_7 = arith.constant 0 : index
    %12 = vector.load %arg7[%c0_6, %c0_7] : memref<128x128xf32, #tpu.memory_space<vmem>>, vector<32x32xf32>
    tpu.vector_store %arg7[%c0_6, %c0_7], %11 {strides = array<i32>} : memref<128x128xf32, #tpu.memory_space<vmem>>, vector<32x32xf32>,
    %c1 = arith.constant 1 : index
    %c0_8 = arith.constant 0 : index
    %c0_9 = arith.constant 0 : index
    %13 = vector.load %arg3[%c1, %c0_8, %c0_9] : memref<4x32x32xf32, #tpu.memory_space<vmem>>, vector<1x32x32xf32>
    %14 = vector.shape_cast %13 : vector<1x32x32xf32> to vector<32x32xf32>
    %cst_10 = arith.constant 0.000000e+00 : f32
    %15 = vector.broadcast %cst_10 : f32 to vector<32x32xf32>
    %16 = arith.maximumf %14, %15 : vector<32x32xf32>
    %17 = math.absf %14 : vector<32x32xf32>
    %cst_11 = arith.constant 0.000000e+00 : f32
    %18 = vector.broadcast %cst_11 : f32 to vector<32x32xf32>
    %19 = arith.subf %18, %17 : vector<32x32xf32>
    %20 = math.exp %19 : vector<32x32xf32>
    %21 = math.log1p %20 : vector<32x32xf32>
    %22 = arith.addf %16, %21 : vector<32x32xf32>
    %c32 = arith.constant 32 : index
    %c32_12 = arith.constant 32 : index
    %23 = vector.load %arg7[%c32, %c32_12] : memref<128x128xf32, #tpu.memory_space<vmem>>, vector<32x32xf32>
    tpu.vector_store %arg7[%c32, %c32_12], %22 {strides = array<i32>} : memref<128x128xf32, #tpu.memory_space<vmem>>, vector<32x32xf32>,
    %c2 = arith.constant 2 : index
    %c0_13 = arith.constant 0 : index
    %c0_14 = arith.constant 0 : index
    %24 = vector.load %arg3[%c2, %c0_13, %c0_14] : memref<4x32x32xf32, #tpu.memory_space<vmem>>, vector<1x32x32xf32>
    %25 = vector.shape_cast %24 : vector<1x32x32xf32> to vector<32x32xf32>
    %cst_15 = arith.constant 0.000000e+00 : f32
    %26 = vector.broadcast %cst_15 : f32 to vector<32x32xf32>
    %27 = arith.maximumf %25, %26 : vector<32x32xf32>
    %28 = math.absf %25 : vector<32x32xf32>
    %cst_16 = arith.constant 0.000000e+00 : f32
    %29 = vector.broadcast %cst_16 : f32 to vector<32x32xf32>
    %30 = arith.subf %29, %28 : vector<32x32xf32>
    %31 = math.exp %30 : vector<32x32xf32>
    %32 = math.log1p %31 : vector<32x32xf32>
    %33 = arith.addf %27, %32 : vector<32x32xf32>
    %c64 = arith.constant 64 : index
    %c64_17 = arith.constant 64 : index
    %34 = vector.load %arg7[%c64, %c64_17] : memref<128x128xf32, #tpu.memory_space<vmem>>, vector<32x32xf32>
    tpu.vector_store %arg7[%c64, %c64_17], %33 {strides = array<i32>} : memref<128x128xf32, #tpu.memory_space<vmem>>, vector<32x32xf32>,
    %c3 = arith.constant 3 : index
    %c0_18 = arith.constant 0 : index
    %c0_19 = arith.constant 0 : index
    %35 = vector.load %arg3[%c3, %c0_18, %c0_19] : memref<4x32x32xf32, #tpu.memory_space<vmem>>, vector<1x32x32xf32>
    %36 = vector.shape_cast %35 : vector<1x32x32xf32> to vector<32x32xf32>
    %cst_20 = arith.constant 0.000000e+00 : f32
    %37 = vector.broadcast %cst_20 : f32 to vector<32x32xf32>
    %38 = arith.maximumf %36, %37 : vector<32x32xf32>
    %39 = math.absf %36 : vector<32x32xf32>
    %cst_21 = arith.constant 0.000000e+00 : f32
    %40 = vector.broadcast %cst_21 : f32 to vector<32x32xf32>
    %41 = arith.subf %40, %39 : vector<32x32xf32>
    %42 = math.exp %41 : vector<32x32xf32>
    %43 = math.log1p %42 : vector<32x32xf32>
    %44 = arith.addf %38, %43 : vector<32x32xf32>
    %c96 = arith.constant 96 : index
    %c96_22 = arith.constant 96 : index
    %45 = vector.load %arg7[%c96, %c96_22] : memref<128x128xf32, #tpu.memory_space<vmem>>, vector<32x32xf32>
    tpu.vector_store %arg7[%c96, %c96_22], %44 {strides = array<i32>} : memref<128x128xf32, #tpu.memory_space<vmem>>, vector<32x32xf32>,
    %c0_23 = arith.constant 0 : index
    %c0_24 = arith.constant 0 : index
    %46 = vector.load %arg2[%c0_23, %c0_24] : memref<8x128xf32, #tpu.memory_space<vmem>>, vector<8x128xf32>
    %c0_25 = arith.constant 0 : index
    %c0_26 = arith.constant 0 : index
    %47 = vector.load %arg7[%c0_25, %c0_26] : memref<128x128xf32, #tpu.memory_space<vmem>>, vector<128x128xf32>
    %cst_27 = arith.constant dense<0.000000e+00> : vector<8x128xf32>
    %48 = tpu.matmul %46, %47, %cst_27 {dimension_numbers = #tpu.dot_dimension_numbers<[1], [0], [0], [1], [0, 0, 1, 1], [], []>} : vector<8x128xf32>, vector<128x128xf32>, vector<8x128xf32> -> vector<8x128xf32>
    %c0_28 = arith.constant 0 : index
    %c0_29 = arith.constant 0 : index
    %49 = vector.load %arg4[%c0_28, %c0_29] : memref<1x128xf32, #tpu.memory_space<vmem>>, vector<1x128xf32>
    %50 = vector.broadcast %49 : vector<1x128xf32> to vector<8x128xf32>
    %51 = arith.addf %48, %50 : vector<8x128xf32>
    %c0_30 = arith.constant 0 : index
    %c0_31 = arith.constant 0 : index
    %52 = vector.load %arg5[%c0_30, %c0_31] : memref<1x128xf32, #tpu.memory_space<vmem>>, vector<1x128xf32>
    %53 = math.tanh %52 : vector<1x128xf32>
    %54 = math.tanh %51 : vector<8x128xf32>
    %55 = vector.broadcast %53 : vector<1x128xf32> to vector<8x128xf32>
    %56 = arith.mulf %55, %54 : vector<8x128xf32>
    %57 = arith.addf %51, %56 : vector<8x128xf32>
    %c0_32 = arith.constant 0 : index
    %c0_33 = arith.constant 0 : index
    %58 = vector.load %arg6[%c0_32, %c0_33] : memref<8x128xf32, #tpu.memory_space<vmem>>, vector<8x128xf32>
    tpu.vector_store %arg6[%c0_32, %c0_33], %57 {strides = array<i32>} : memref<8x128xf32, #tpu.memory_space<vmem>>, vector<8x128xf32>,
    return
  }
  func.func @transform_0(%arg0: i32, %arg1: i32) -> (i32, i32) {
    %c0_i32 = arith.constant 0 : i32
    return %arg1, %arg0 : i32, i32
  }
  func.func @transform_1(%arg0: i32, %arg1: i32) -> (i32, i32, i32) {
    %c0_i32 = arith.constant 0 : i32
    %c0_i32_0 = arith.constant 0 : i32
    %c0_i32_1 = arith.constant 0 : i32
    return %arg0, %c0_i32, %c0_i32_0 : i32, i32, i32
  }
  func.func @transform_2(%arg0: i32, %arg1: i32) -> (i32, i32) {
    %c0_i32 = arith.constant 0 : i32
    %c0_i32_0 = arith.constant 0 : i32
    return %c0_i32, %arg0 : i32, i32
  }
  func.func @transform_3(%arg0: i32, %arg1: i32) -> (i32, i32) {
    %c0_i32 = arith.constant 0 : i32
    %c0_i32_0 = arith.constant 0 : i32
    return %c0_i32, %arg0 : i32, i32
  }
  func.func @transform_4(%arg0: i32, %arg1: i32) -> (i32, i32) {
    %c0_i32 = arith.constant 0 : i32
    return %arg1, %arg0 : i32, i32
  }
}

</mosaic_0001>

<llo_original>
// kernel: cdf_mapping_block.1
$region0: #{cdf_mapping_block.1}
  #allocation0 [shape = 'u32[]', space=smem, size = 0x4, offset = 0x4, fixed_abs, tag = 'smem constant byte address 0x4 - core index']
  #allocation1 [shape = 'u32[144,128]{1,0:T(1,128)}', space=vmem, size = 0x12000, scoped, tag = 'internal scratch']
  #allocation2 [shape = 'f32[128,128]{1,0:T(8,128)}', space=vmem, size = 0x10000, scoped, tag = 'scratch operand']
  %s0 = inlined_call_operand.vmem [shape: f32[8,128], index: 0, kind: input, shape index: {}]
  %s1 = inlined_call_operand.hbm [shape: f32[4,32,32], index: 1, kind: input, shape index: {}]
  %s2 = inlined_call_operand.vmem [shape: f32[1,128], index: 2, kind: input, shape index: {}]
  %s3 = inlined_call_operand.vmem [shape: f32[1,128], index: 3, kind: input, shape index: {}]
  %s4 = inlined_call_operand.vmem [shape: f32[8,128], index: 4, kind: output, shape index: {}]
  %s5 = sld [smem:[#allocation0]]
  $region30: #{cdf_mapping_block.1} parent=0
    _
  %s7 = ssub.s32 1, %s5
  %s8 = scalar_select 0, %s7, %s5
  $region1: #{cdf_mapping_block.1} parent=0
    #allocation3 [shape = 'u8[65536]{0}', space=vmem, size = 0x10000, scoped, tag = 'input window, operand 1, single buffered']
    #allocation4 [shape = 's32[1]{0}', space=sflag, size = 0x4, scoped, tag = 'scoped memory for cdf_mapping_block.1']
    %9 = vsyncpa [#allocation4], 0
    // Predicated region
    $region2: #{cdf_mapping_block.1} parent=1 // pred_check
      _
    $region3: #{cdf_mapping_block.1} parent=1 // pred_check_branch
      %11 = sbr.rel (0) target = $region5
    $region4: #{cdf_mapping_block.1} parent=1 // pred_region
      _
    $region5: #{cdf_mapping_block.1} parent=1 // pred_fallthru
      _
    // Predicated region
    $region6: #{cdf_mapping_block.1} parent=1 // pred_check
      _
    $region7: #{cdf_mapping_block.1} parent=1 // pred_check_branch
      %13 = sbr.rel (0) target = $region9
    $region8: #{cdf_mapping_block.1} parent=1 // pred_region
      %s15 = ssub.s32 2048, 2048
      %16 = vsyncadd [#allocation4], %s15
      %s17 = sshll.u32 [#allocation3], 4
      %s18 = int_to_ptr.vmem [resolvable:$true] %s17
      %23 = dma.hbm_to_vmem [thread:$0]  %s1, 2048, %s18, [#allocation4], 128, 128, 8
    $region9: #{cdf_mapping_block.1} parent=1 // pred_fallthru
      _
    // Predicated region
    $region10: #{cdf_mapping_block.1} parent=1 // pred_check
      _
    $region11: #{cdf_mapping_block.1} parent=1 // pred_check_branch
      %25 = sbr.rel (0) target = $region13
    $region12: #{cdf_mapping_block.1} parent=1 // pred_region
      _
    $region13: #{cdf_mapping_block.1} parent=1 // pred_fallthru
      _
    // Predicated region
    $region14: #{cdf_mapping_block.1} parent=1 // pred_check
      _
    $region15: #{cdf_mapping_block.1} parent=1 // pred_check_branch
      %27 = sbr.rel (0) target = $region17
    $region16: #{cdf_mapping_block.1} parent=1 // pred_region
      _
    $region17: #{cdf_mapping_block.1} parent=1 // pred_fallthru
      _
    // Predicated region
    $region18: #{cdf_mapping_block.1} parent=1 // pred_check
      _
    $region19: #{cdf_mapping_block.1} parent=1 // pred_check_branch
      %29 = sbr.rel (0) target = $region21
    $region20: #{cdf_mapping_block.1} parent=1 // pred_region
      %30 = dma.done [#allocation4], 2048
    $region21: #{cdf_mapping_block.1} parent=1 // pred_fallthru
      _
    %31 = vst [vmem:[#allocation2] sm:$0xff] 0.0
    %32 = vst [vmem:[#allocation2 + $0x8] sm:$0xff] 0.0
    %33 = vst [vmem:[#allocation2 + $0x10] sm:$0xff] 0.0
    %34 = vst [vmem:[#allocation2 + $0x18] sm:$0xff] 0.0
    %35 = vst [vmem:[#allocation2 + $0x20] sm:$0xff] 0.0
    %36 = vst [vmem:[#allocation2 + $0x28] sm:$0xff] 0.0
    %37 = vst [vmem:[#allocation2 + $0x30] sm:$0xff] 0.0
    %38 = vst [vmem:[#allocation2 + $0x38] sm:$0xff] 0.0
    %39 = vst [vmem:[#allocation2 + $0x40] sm:$0xff] 0.0
    %40 = vst [vmem:[#allocation2 + $0x48] sm:$0xff] 0.0
    %41 = vst [vmem:[#allocation2 + $0x50] sm:$0xff] 0.0
    %42 = vst [vmem:[#allocation2 + $0x58] sm:$0xff] 0.0
    %43 = vst [vmem:[#allocation2 + $0x60] sm:$0xff] 0.0
    %44 = vst [vmem:[#allocation2 + $0x68] sm:$0xff] 0.0
    %45 = vst [vmem:[#allocation2 + $0x70] sm:$0xff] 0.0
    %46 = vst [vmem:[#allocation2 + $0x78] sm:$0xff] 0.0
    %v47 = vld [vmem:[#allocation3] sm:$0xff]
    %v48 = vld [vmem:[#allocation3 + $0x8] sm:$0xff]
    %v49 = vld [vmem:[#allocation3 + $0x10] sm:$0xff]
    %v50 = vld [vmem:[#allocation3 + $0x18] sm:$0xff]
    %v51 = vmax.f32 %v47, 0.0
    %v52 = vmax.f32 %v48, 0.0
    %v53 = vmax.f32 %v49, 0.0
    %v54 = vmax.f32 %v50, 0.0
    %v55 = vand.u32 2147483647, %v47
    %v56 = vand.u32 2147483647, %v48
    %v57 = vand.u32 2147483647, %v49
    %v58 = vand.u32 2147483647, %v50
    %v59 = vsub.f32 0.0, %v55
    %v60 = vsub.f32 0.0, %v56
    %v61 = vsub.f32 0.0, %v57
    %v62 = vsub.f32 0.0, %v58
    %v63 = vmul.f32 %v59, 1.442695
    %v64 = vpow.pop %v63
    %v65 = vmul.f32 %v60, 1.442695
    %v66 = vpow.pop %v65
    %v67 = vmul.f32 %v61, 1.442695
    %v68 = vpow.pop %v67
    %v69 = vmul.f32 %v62, 1.442695
    %v70 = vpow.pop %v69
    %v71 = vadd.f32 %v64, 1.0
    %v72 = vlog2.pop %v71
    %v73 = vmul.f32 %v72, 0.6931472
    %v74 = vmul.f32 -0.5, %v64
    %v75 = vadd.f32 %v74, 1.0
    %v76 = vmul.f32 %v75, %v64
    %v77 = vand.u32 2147483647, %v64
    %vm78 = vcmp.lt.f32.partialorder %v77, 0.0004427343
    %v79 = vsel %vm78, %v76, %v73
    %v80 = vadd.f32 %v66, 1.0
    %v81 = vlog2.pop %v80
    %v82 = vmul.f32 %v81, 0.6931472
    %v83 = vmul.f32 -0.5, %v66
    %v84 = vadd.f32 %v83, 1.0
    %v85 = vmul.f32 %v84, %v66
    %v86 = vand.u32 2147483647, %v66
    %vm87 = vcmp.lt.f32.partialorder %v86, 0.0004427343
    %v88 = vsel %vm87, %v85, %v82
    %v89 = vadd.f32 %v68, 1.0
    %v90 = vlog2.pop %v89
    %v91 = vmul.f32 %v90, 0.6931472
    %v92 = vmul.f32 -0.5, %v68
    %v93 = vadd.f32 %v92, 1.0
    %v94 = vmul.f32 %v93, %v68
    %v95 = vand.u32 2147483647, %v68
    %vm96 = vcmp.lt.f32.partialorder %v95, 0.0004427343
    %v97 = vsel %vm96, %v94, %v91
    %v98 = vadd.f32 %v70, 1.0
    %v99 = vlog2.pop %v98
    %v100 = vmul.f32 %v99, 0.6931472
    %v101 = vmul.f32 -0.5, %v70
    %v102 = vadd.f32 %v101, 1.0
    %v103 = vmul.f32 %v102, %v70
    %v104 = vand.u32 2147483647, %v70
    %vm105 = vcmp.lt.f32.partialorder %v104, 0.0004427343
    %v106 = vsel %vm105, %v103, %v100
    %v107 = vadd.f32 %v51, %v79
    %v108 = vadd.f32 %v52, %v88
    %v109 = vadd.f32 %v53, %v97
    %v110 = vadd.f32 %v54, %v106
    %vm111 = vcmask 261120
    %112 = vst.msk [vmem:[#allocation2] sm:$0xff] %vm111, %v107
    %113 = vst.msk [vmem:[#allocation2 + $0x8] sm:$0xff] %vm111, %v108
    %114 = vst.msk [vmem:[#allocation2 + $0x10] sm:$0xff] %vm111, %v109
    %115 = vst.msk [vmem:[#allocation2 + $0x18] sm:$0xff] %vm111, %v110
    %s116 = scalar_lea.vmem [#allocation3], 32
    %v117 = vld [vmem:[%s116] sm:$0xff]
    %v118 = vld [vmem:[%s116 + $0x8] sm:$0xff]
    %v119 = vld [vmem:[%s116 + $0x10] sm:$0xff]
    %v120 = vld [vmem:[%s116 + $0x18] sm:$0xff]
    %v121 = vmax.f32 %v117, 0.0
    %v122 = vmax.f32 %v118, 0.0
    %v123 = vmax.f32 %v119, 0.0
    %v124 = vmax.f32 %v120, 0.0
    %v125 = vand.u32 2147483647, %v117
    %v126 = vand.u32 2147483647, %v118
    %v127 = vand.u32 2147483647, %v119
    %v128 = vand.u32 2147483647, %v120
    %v129 = vsub.f32 0.0, %v125
    %v130 = vsub.f32 0.0, %v126
    %v131 = vsub.f32 0.0, %v127
    %v132 = vsub.f32 0.0, %v128
    %v133 = vmul.f32 %v129, 1.442695
    %v134 = vpow.pop %v133
    %v135 = vmul.f32 %v130, 1.442695
    %v136 = vpow.pop %v135
    %v137 = vmul.f32 %v131, 1.442695
    %v138 = vpow.pop %v137
    %v139 = vmul.f32 %v132, 1.442695
    %v140 = vpow.pop %v139
    %v141 = vadd.f32 %v134, 1.0
    %v142 = vlog2.pop %v141
    %v143 = vmul.f32 %v142, 0.6931472
    %v144 = vmul.f32 -0.5, %v134
    %v145 = vadd.f32 %v144, 1.0
    %v146 = vmul.f32 %v145, %v134
    %v147 = vand.u32 2147483647, %v134
    %vm148 = vcmp.lt.f32.partialorder %v147, 0.0004427343
    %v149 = vsel %vm148, %v146, %v143
    %v150 = vadd.f32 %v136, 1.0
    %v151 = vlog2.pop %v150
    %v152 = vmul.f32 %v151, 0.6931472
    %v153 = vmul.f32 -0.5, %v136
    %v154 = vadd.f32 %v153, 1.0
    %v155 = vmul.f32 %v154, %v136
    %v156 = vand.u32 2147483647, %v136
    %vm157 = vcmp.lt.f32.partialorder %v156, 0.0004427343
    %v158 = vsel %vm157, %v155, %v152
    %v159 = vadd.f32 %v138, 1.0
    %v160 = vlog2.pop %v159
    %v161 = vmul.f32 %v160, 0.6931472
    %v162 = vmul.f32 -0.5, %v138
    %v163 = vadd.f32 %v162, 1.0
    %v164 = vmul.f32 %v163, %v138
    %v165 = vand.u32 2147483647, %v138
    %vm166 = vcmp.lt.f32.partialorder %v165, 0.0004427343
    %v167 = vsel %vm166, %v164, %v161
    %v168 = vadd.f32 %v140, 1.0
    %v169 = vlog2.pop %v168
    %v170 = vmul.f32 %v169, 0.6931472
    %v171 = vmul.f32 -0.5, %v140
    %v172 = vadd.f32 %v171, 1.0
    %v173 = vmul.f32 %v172, %v140
    %v174 = vand.u32 2147483647, %v140
    %vm175 = vcmp.lt.f32.partialorder %v174, 0.0004427343
    %v176 = vsel %vm175, %v173, %v170
    %v177 = vadd.f32 %v121, %v149
    %v178 = vadd.f32 %v122, %v158
    %v179 = vadd.f32 %v123, %v167
    %v180 = vadd.f32 %v124, %v176
    %185 = vrot.lane.b32.xlu0 %v177, 32
    %v186 = vpop.permute.xlu0 %185
    %187 = vrot.lane.b32.xlu0 %v178, 32
    %v188 = vpop.permute.xlu0 %187
    %189 = vrot.lane.b32.xlu0 %v179, 32
    %v190 = vpop.permute.xlu0 %189
    %191 = vrot.lane.b32.xlu0 %v180, 32
    %v192 = vpop.permute.xlu0 %191
    %vm197 = vcmask 523520
    %198 = vst.msk [vmem:[#allocation2 + $0x20] sm:$0xff] %vm197, %v186
    %199 = vst.msk [vmem:[#allocation2 + $0x28] sm:$0xff] %vm197, %v188
    %200 = vst.msk [vmem:[#allocation2 + $0x30] sm:$0xff] %vm197, %v190
    %201 = vst.msk [vmem:[#allocation2 + $0x38] sm:$0xff] %vm197, %v192
    %s202 = scalar_lea.vmem [#allocation3], 64
    %v203 = vld [vmem:[%s202] sm:$0xff]
    %v204 = vld [vmem:[%s202 + $0x8] sm:$0xff]
    %v205 = vld [vmem:[%s202 + $0x10] sm:$0xff]
    %v206 = vld [vmem:[%s202 + $0x18] sm:$0xff]
    %v207 = vmax.f32 %v203, 0.0
    %v208 = vmax.f32 %v204, 0.0
    %v209 = vmax.f32 %v205, 0.0
    %v210 = vmax.f32 %v206, 0.0
    %v211 = vand.u32 2147483647, %v203
    %v212 = vand.u32 2147483647, %v204
    %v213 = vand.u32 2147483647, %v205
    %v214 = vand.u32 2147483647, %v206
    %v215 = vsub.f32 0.0, %v211
    %v216 = vsub.f32 0.0, %v212
    %v217 = vsub.f32 0.0, %v213
    %v218 = vsub.f32 0.0, %v214
    %v219 = vmul.f32 %v215, 1.442695
    %v220 = vpow.pop %v219
    %v221 = vmul.f32 %v216, 1.442695
    %v222 = vpow.pop %v221
    %v223 = vmul.f32 %v217, 1.442695
    %v224 = vpow.pop %v223
    %v225 = vmul.f32 %v218, 1.442695
    %v226 = vpow.pop %v225
    %v227 = vadd.f32 %v220, 1.0
    %v228 = vlog2.pop %v227
    %v229 = vmul.f32 %v228, 0.6931472
    %v230 = vmul.f32 -0.5, %v220
    %v231 = vadd.f32 %v230, 1.0
    %v232 = vmul.f32 %v231, %v220
    %v233 = vand.u32 2147483647, %v220
    %vm234 = vcmp.lt.f32.partialorder %v233, 0.0004427343
    %v235 = vsel %vm234, %v232, %v229
    %v236 = vadd.f32 %v222, 1.0
    %v237 = vlog2.pop %v236
    %v238 = vmul.f32 %v237, 0.6931472
    %v239 = vmul.f32 -0.5, %v222
    %v240 = vadd.f32 %v239, 1.0
    %v241 = vmul.f32 %v240, %v222
    %v242 = vand.u32 2147483647, %v222
    %vm243 = vcmp.lt.f32.partialorder %v242, 0.0004427343
    %v244 = vsel %vm243, %v241, %v238
    %v245 = vadd.f32 %v224, 1.0
    %v246 = vlog2.pop %v245
    %v247 = vmul.f32 %v246, 0.6931472
    %v248 = vmul.f32 -0.5, %v224
    %v249 = vadd.f32 %v248, 1.0
    %v250 = vmul.f32 %v249, %v224
    %v251 = vand.u32 2147483647, %v224
    %vm252 = vcmp.lt.f32.partialorder %v251, 0.0004427343
    %v253 = vsel %vm252, %v250, %v247
    %v254 = vadd.f32 %v226, 1.0
    %v255 = vlog2.pop %v254
    %v256 = vmul.f32 %v255, 0.6931472
    %v257 = vmul.f32 -0.5, %v226
    %v258 = vadd.f32 %v257, 1.0
    %v259 = vmul.f32 %v258, %v226
    %v260 = vand.u32 2147483647, %v226
    %vm261 = vcmp.lt.f32.partialorder %v260, 0.0004427343
    %v262 = vsel %vm261, %v259, %v256
    %v263 = vadd.f32 %v207, %v235
    %v264 = vadd.f32 %v208, %v244
    %v265 = vadd.f32 %v209, %v253
    %v266 = vadd.f32 %v210, %v262
    %271 = vrot.lane.b32.xlu0 %v263, 64
    %v272 = vpop.permute.xlu0 %271
    %273 = vrot.lane.b32.xlu0 %v264, 64
    %v274 = vpop.permute.xlu0 %273
    %275 = vrot.lane.b32.xlu0 %v265, 64
    %v276 = vpop.permute.xlu0 %275
    %277 = vrot.lane.b32.xlu0 %v266, 64
    %v278 = vpop.permute.xlu0 %277
    %vm283 = vcmask 785920
    %284 = vst.msk [vmem:[#allocation2 + $0x40] sm:$0xff] %vm283, %v272
    %285 = vst.msk [vmem:[#allocation2 + $0x48] sm:$0xff] %vm283, %v274
    %286 = vst.msk [vmem:[#allocation2 + $0x50] sm:$0xff] %vm283, %v276
    %287 = vst.msk [vmem:[#allocation2 + $0x58] sm:$0xff] %vm283, %v278
    %s288 = scalar_lea.vmem [#allocation3], 96
    %v289 = vld [vmem:[%s288] sm:$0xff]
    %v290 = vld [vmem:[%s288 + $0x8] sm:$0xff]
    %v291 = vld [vmem:[%s288 + $0x10] sm:$0xff]
    %v292 = vld [vmem:[%s288 + $0x18] sm:$0xff]
    %v293 = vmax.f32 %v289, 0.0
    %v294 = vmax.f32 %v290, 0.0
    %v295 = vmax.f32 %v291, 0.0
    %v296 = vmax.f32 %v292, 0.0
    %v297 = vand.u32 2147483647, %v289
    %v298 = vand.u32 2147483647, %v290
    %v299 = vand.u32 2147483647, %v291
    %v300 = vand.u32 2147483647, %v292
    %v301 = vsub.f32 0.0, %v297
    %v302 = vsub.f32 0.0, %v298
    %v303 = vsub.f32 0.0, %v299
    %v304 = vsub.f32 0.0, %v300
    %v305 = vmul.f32 %v301, 1.442695
    %v306 = vpow.pop %v305
    %v307 = vmul.f32 %v302, 1.442695
    %v308 = vpow.pop %v307
    %v309 = vmul.f32 %v303, 1.442695
    %v310 = vpow.pop %v309
    %v311 = vmul.f32 %v304, 1.442695
    %v312 = vpow.pop %v311
    %v313 = vadd.f32 %v306, 1.0
    %v314 = vlog2.pop %v313
    %v315 = vmul.f32 %v314, 0.6931472
    %v316 = vmul.f32 -0.5, %v306
    %v317 = vadd.f32 %v316, 1.0
    %v318 = vmul.f32 %v317, %v306
    %v319 = vand.u32 2147483647, %v306
    %vm320 = vcmp.lt.f32.partialorder %v319, 0.0004427343
    %v321 = vsel %vm320, %v318, %v315
    %v322 = vadd.f32 %v308, 1.0
    %v323 = vlog2.pop %v322
    %v324 = vmul.f32 %v323, 0.6931472
    %v325 = vmul.f32 -0.5, %v308
    %v326 = vadd.f32 %v325, 1.0
    %v327 = vmul.f32 %v326, %v308
    %v328 = vand.u32 2147483647, %v308
    %vm329 = vcmp.lt.f32.partialorder %v328, 0.0004427343
    %v330 = vsel %vm329, %v327, %v324
    %v331 = vadd.f32 %v310, 1.0
    %v332 = vlog2.pop %v331
    %v333 = vmul.f32 %v332, 0.6931472
    %v334 = vmul.f32 -0.5, %v310
    %v335 = vadd.f32 %v334, 1.0
    %v336 = vmul.f32 %v335, %v310
    %v337 = vand.u32 2147483647, %v310
    %vm338 = vcmp.lt.f32.partialorder %v337, 0.0004427343
    %v339 = vsel %vm338, %v336, %v333
    %v340 = vadd.f32 %v312, 1.0
    %v341 = vlog2.pop %v340
    %v342 = vmul.f32 %v341, 0.6931472
    %v343 = vmul.f32 -0.5, %v312
    %v344 = vadd.f32 %v343, 1.0
    %v345 = vmul.f32 %v344, %v312
    %v346 = vand.u32 2147483647, %v312
    %vm347 = vcmp.lt.f32.partialorder %v346, 0.0004427343
    %v348 = vsel %vm347, %v345, %v342
    %v349 = vadd.f32 %v293, %v321
    %v350 = vadd.f32 %v294, %v330
    %v351 = vadd.f32 %v295, %v339
    %v352 = vadd.f32 %v296, %v348
    %357 = vrot.lane.b32.xlu0 %v349, 96
    %v358 = vpop.permute.xlu0 %357
    %359 = vrot.lane.b32.xlu0 %v350, 96
    %v360 = vpop.permute.xlu0 %359
    %361 = vrot.lane.b32.xlu0 %v351, 96
    %v362 = vpop.permute.xlu0 %361
    %363 = vrot.lane.b32.xlu0 %v352, 96
    %v364 = vpop.permute.xlu0 %363
    %vm369 = vcmask 1048320
    %370 = vst.msk [vmem:[#allocation2 + $0x60] sm:$0xff] %vm369, %v358
    %371 = vst.msk [vmem:[#allocation2 + $0x68] sm:$0xff] %vm369, %v360
    %372 = vst.msk [vmem:[#allocation2 + $0x70] sm:$0xff] %vm369, %v362
    %373 = vst.msk [vmem:[#allocation2 + $0x78] sm:$0xff] %vm369, %v364
    %v374 = vld [vmem:[%s0] sm:$0xff]
    %v375 = vld [vmem:[#allocation2] sm:$0xff]
    %v376 = vld [vmem:[#allocation2 + $0x8] sm:$0xff]
    %v377 = vld [vmem:[#allocation2 + $0x10] sm:$0xff]
    %v378 = vld [vmem:[#allocation2 + $0x18] sm:$0xff]
    %v379 = vld [vmem:[#allocation2 + $0x20] sm:$0xff]
    %v380 = vld [vmem:[#allocation2 + $0x28] sm:$0xff]
    %v381 = vld [vmem:[#allocation2 + $0x30] sm:$0xff]
    %v382 = vld [vmem:[#allocation2 + $0x38] sm:$0xff]
    %v383 = vld [vmem:[#allocation2 + $0x40] sm:$0xff]
    %v384 = vld [vmem:[#allocation2 + $0x48] sm:$0xff]
    %v385 = vld [vmem:[#allocation2 + $0x50] sm:$0xff]
    %v386 = vld [vmem:[#allocation2 + $0x58] sm:$0xff]
    %v387 = vld [vmem:[#allocation2 + $0x60] sm:$0xff]
    %v388 = vld [vmem:[#allocation2 + $0x68] sm:$0xff]
    %v389 = vld [vmem:[#allocation2 + $0x70] sm:$0xff]
    %v390 = vld [vmem:[#allocation2 + $0x78] sm:$0xff]
    %v391 = vld [vmem:[%s2] sm:$0x1]
    %v393 = vlaneseq
    %v394 = vshrl.u32 %v393, 7
    %v395 = vsub.s32 0, %v394
    %v396 = vrot.slane %v391, %v395
    %398 = vmatprep.subr.mxu0 0.0
    %399 = vmatpush1.msra.mxu0 %v375
    %400 = vmatprep.subr.mxu0 0.0
    %401 = vmatpush1.msra.mxu0 %v376
    %402 = vmatprep.subr.mxu0 0.0
    %403 = vmatpush1.msra.mxu0 %v377
    %404 = vmatprep.subr.mxu0 0.0
    %405 = vmatpush1.msra.mxu0 %v378
    %406 = vmatprep.subr.mxu0 0.0
    %407 = vmatpush1.msra.mxu0 %v379
    %408 = vmatprep.subr.mxu0 0.0
    %409 = vmatpush1.msra.mxu0 %v380
    %410 = vmatprep.subr.mxu0 0.0
    %411 = vmatpush1.msra.mxu0 %v381
    %412 = vmatprep.subr.mxu0 0.0
    %413 = vmatpush1.msra.mxu0 %v382
    %414 = vmatprep.subr.mxu0 0.0
    %415 = vmatpush1.msra.mxu0 %v383
    %416 = vmatprep.subr.mxu0 0.0
    %417 = vmatpush1.msra.mxu0 %v384
    %418 = vmatprep.subr.mxu0 0.0
    %419 = vmatpush1.msra.mxu0 %v385
    %420 = vmatprep.subr.mxu0 0.0
    %421 = vmatpush1.msra.mxu0 %v386
    %422 = vmatprep.subr.mxu0 0.0
    %423 = vmatpush1.msra.mxu0 %v387
    %424 = vmatprep.subr.mxu0 0.0
    %425 = vmatpush1.msra.mxu0 %v388
    %426 = vmatprep.subr.mxu0 0.0
    %427 = vmatpush1.msra.mxu0 %v389
    %428 = vmatprep.subr.mxu0 0.0
    %429 = vmatpush1.msra.mxu0 %v390
    %430 = vmatprep.subr.mxu0 0.0
    %431 = vmatpush1.msra.mxu0 0.0
    %432 = vmatprep.subr.mxu0 0.0
    %433 = vmatpush1.msra.mxu0 0.0
    %434 = vmatprep.subr.mxu0 0.0
    %435 = vmatpush1.msra.mxu0 0.0
    %436 = vmatprep.subr.mxu0 0.0
    %437 = vmatpush1.msra.mxu0 0.0
    %438 = vmatprep.subr.mxu0 0.0
    %439 = vmatpush1.msra.mxu0 0.0
    %440 = vmatprep.subr.mxu0 0.0
    %441 = vmatpush1.msra.mxu0 0.0
    %442 = vmatprep.subr.mxu0 0.0
    %443 = vmatpush1.msra.mxu0 0.0
    %444 = vmatprep.subr.mxu0 0.0
    %445 = vmatpush1.msra.mxu0 0.0
    %446 = vmatprep.subr.mxu0 0.0
    %447 = vmatpush1.msra.mxu0 0.0
    %448 = vmatprep.subr.mxu0 0.0
    %449 = vmatpush1.msra.mxu0 0.0
    %450 = vmatprep.subr.mxu0 0.0
    %451 = vmatpush1.msra.mxu0 0.0
    %452 = vmatprep.subr.mxu0 0.0
    %453 = vmatpush1.msra.mxu0 0.0
    %454 = vmatprep.subr.mxu0 0.0
    %455 = vmatpush1.msra.mxu0 0.0
    %456 = vmatprep.subr.mxu0 0.0
    %457 = vmatpush1.msra.mxu0 0.0
    %458 = vmatprep.subr.mxu0 0.0
    %459 = vmatpush1.msra.mxu0 0.0
    %460 = vmatprep.subr.mxu0 0.0
    %461 = vmatpush1.msra.mxu0 0.0
    %462 = vmatprep.mubr.f32.mxu0 0.0
    %463 = vmatmul.mubr.f32.gmra.mrb[0].mxu0 %v374
    %v464 = vpop.f32.mrb[0].mxu0
    %v465 = vadd.f32 %v396, %v464
    %v466 = vpop.f32.mrb[0].mxu0
    %467 = vdwg.mxu0
    %v468 = vld [vmem:[%s3] sm:$0x1]
    %v469 = vtanh.pop %v468
    %v470 = vtanh.pop %v465
    %v472 = vlaneseq
    %v473 = vshrl.u32 %v472, 7
    %v474 = vsub.s32 0, %v473
    %v475 = vrot.slane %v469, %v474
    %v477 = vmul.f32 %v475, %v470
    %v478 = vadd.f32 %v465, %v477
    %479 = vst [vmem:[%s4] sm:$0xff] %v478
    // Predicated region
    $region22: #{cdf_mapping_block.1} parent=1 // pred_check
      _
    $region23: #{cdf_mapping_block.1} parent=1 // pred_check_branch
      %481 = sbr.rel (0) target = $region25
    $region24: #{cdf_mapping_block.1} parent=1 // pred_region
      _
    $region25: #{cdf_mapping_block.1} parent=1 // pred_fallthru
      _
    // Predicated region
    $region26: #{cdf_mapping_block.1} parent=1 // pred_check
      _
    $region27: #{cdf_mapping_block.1} parent=1 // pred_check_branch
      %483 = sbr.rel (0) target = $region29
    $region28: #{cdf_mapping_block.1} parent=1 // pred_region
      _
    $region29: #{cdf_mapping_block.1} parent=1 // pred_fallthru
      _
    %484 = vsyncpa [#allocation4], 1

</llo_original>
